<compile_context>
chip_gen: v5e
topology: v5e:2x2
jax: 0.10.0
libtpu: 0.0.40
codegen_flags: <defaults>
</compile_context>

<pallas_src>
import jax
import jax.numpy as jnp
from jax.experimental import pallas as pl
from jax.experimental.pallas import tpu as pltpu

_LANE = 128
_SUBLANE = 8
_NEG_INF = -1e30


def _round_up(n, m):
    return ((n + m - 1) // m) * m


# ----------------------------- fused Pallas kernel ---------------------------

def _fused_gru_kernel(x_ref, h0_ref, w_ref, b_ref, wlin_ref, blin_ref,
                      logp_ref, hn_ref):
    """All GRU layers + Linear + LogSoftmax in a single kernel invocation.

    Padded, lane/sublane-aligned shapes:
      x_ref    : (Bp, XP)           f32   layer-0 input
      h0_ref   : (L, Bp, Hp)        f32   initial hidden state
      w_ref    : (L, XP+Hp, 4*Hp)   bf16  fused [Wih ; Whh] per layer,
                                          gate blocks = [r | z | gi_n | gh_n]
      b_ref    : (L, 1, 4*Hp)       f32   fused biases (r/z pre-summed)
      wlin_ref : (Hp, Op)           bf16  head weight (transposed)
      blin_ref : (1, Op)            f32   head bias, -1e30 in padded columns
      logp_ref : (Bp, Op)           f32   log-softmax output
      hn_ref   : (L, Bp, Hp)        f32   new hidden state
    """
    L, Bp, Hp = h0_ref.shape
    XP = x_ref.shape[-1]

    x_part = x_ref[...]                                     # (Bp, XP)
    h_new = None
    for l in range(L):                                      # static unroll
        h_prev = h0_ref[l]                                  # (Bp, Hp)
        xh = jnp.concatenate([x_part, h_prev], axis=-1)     # (Bp, XP+Hp)
        # Single MXU pass per layer: bf16 inputs, f32 accumulation.
        g = jnp.dot(xh.astype(w_ref.dtype), w_ref[l],
                    preferred_element_type=jnp.float32) + b_ref[l]  # (Bp,4Hp)
        # Lane-aligned 128-wide gate blocks (PyTorch gate order r, z, n).
        r = jax.nn.sigmoid(g[:, 0:Hp])
        z = jax.nn.sigmoid(g[:, Hp:2 * Hp])
        n = jnp.tanh(g[:, 2 * Hp:3 * Hp] + r * g[:, 3 * Hp:4 * Hp])
        h_new = (1.0 - z) * n + z * h_prev                  # (Bp, Hp), f32
        hn_ref[l] = h_new
        # Input to the next layer (only the first hidden_size columns carry
        # signal; padded columns stay exactly zero by construction).
        if XP == Hp:
            x_part = h_new
        else:
            x_part = jnp.concatenate(
                [h_new, jnp.zeros((Bp, XP - Hp), h_new.dtype)], axis=-1)

    # Linear head + numerically-stable LogSoftmax (padded logits get -1e30
    # bias so they contribute nothing to max / sum-exp).
    logits = jnp.dot(h_new.astype(wlin_ref.dtype), wlin_ref[...],
                     preferred_element_type=jnp.float32) + blin_ref[...]
    m = jnp.max(logits, axis=-1, keepdims=True)
    s = logits - m
    lse = jnp.log(jnp.sum(jnp.exp(s), axis=-1, keepdims=True))
    logp_ref[...] = s - lse


_VMEM_SPEC = pl.BlockSpec(memory_space=pltpu.MemorySpace.VMEM)


# ------------------------------ module wrapper --------------------------------

class GRUPallas:
    """JAX/Pallas port of the PyTorch GRU module's forward pass."""

    def __init__(self, input_size, hidden_size, output_size, num_layers=1,
                 key=jax.random.PRNGKey(0)):
        self.input_size = input_size
        self.hidden_size = hidden_size
        self.output_size = output_size
        self.num_layers = num_layers

        H = hidden_size
        self.Hp = _round_up(H, _LANE)                     # padded hidden width
        self.XP = _round_up(max(input_size, H), _LANE)    # padded input width
        self.Op = _round_up(output_size, _LANE)           # padded output width

        bound = 1.0 / (hidden_size ** 0.5)
        keys = jax.random.split(key, 4 * num_layers + 2)

        self._raw_layers = []
        w_list, b_list = [], []
        for l in range(num_layers):
            in_sz = input_size if l == 0 else hidden_size
            k0, k1, k2, k3 = keys[4 * l:4 * l + 4]
            w_ih = jax.random.uniform(k0, (3 * H, in_sz), jnp.float32,
                                      -bound, bound)
            w_hh = jax.random.uniform(k1, (3 * H, H), jnp.float32,
                                      -bound, bound)
            b_ih = jax.random.uniform(k2, (3 * H,), jnp.float32, -bound, bound)
            b_hh = jax.random.uniform(k3, (3 * H,), jnp.float32, -bound, bound)
            self._raw_layers.append((w_ih, w_hh, b_ih, b_hh))

            # Pack fused weight (XP+Hp, 4*Hp): rows [0:in_sz] = input part,
            # rows [XP:XP+H] = hidden part; gate blocks 128-lane aligned.
            wit, wht = w_ih.T, w_hh.T                     # (in_sz,3H), (H,3H)
            Hp, XP = self.Hp, self.XP
            wf = jnp.zeros((XP + Hp, 4 * Hp), jnp.float32)
            wf = wf.at[:in_sz, 0:H].set(wit[:, 0:H])                  # r  (x)
            wf = wf.at[:in_sz, Hp:Hp + H].set(wit[:, H:2 * H])        # z  (x)
            wf = wf.at[:in_sz, 2 * Hp:2 * Hp + H].set(wit[:, 2 * H:]) # n  (x)
            wf = wf.at[XP:XP + H, 0:H].set(wht[:, 0:H])               # r  (h)
            wf = wf.at[XP:XP + H, Hp:Hp + H].set(wht[:, H:2 * H])     # z  (h)
            wf = wf.at[XP:XP + H, 3 * Hp:3 * Hp + H].set(wht[:, 2 * H:])  # n (h)
            bf = jnp.zeros((1, 4 * Hp), jnp.float32)
            bf = bf.at[0, 0:H].set(b_ih[0:H] + b_hh[0:H])             # r
            bf = bf.at[0, Hp:Hp + H].set(b_ih[H:2 * H] + b_hh[H:2 * H])  # z
            bf = bf.at[0, 2 * Hp:2 * Hp + H].set(b_ih[2 * H:])        # gi_n
            bf = bf.at[0, 3 * Hp:3 * Hp + H].set(b_hh[2 * H:])        # gh_n
            w_list.append(wf)
            b_list.append(bf)

        self.w_all = jnp.stack(w_list, 0).astype(jnp.bfloat16)  # (L,XP+Hp,4Hp)
        self.b_all = jnp.stack(b_list, 0)                       # (L,1,4Hp) f32

        kl0, kl1 = keys[-2:]
        w_lin = jax.random.uniform(kl0, (output_size, hidden_size),
                                   jnp.float32, -bound, bound)
        b_lin = jax.random.uniform(kl1, (output_size,), jnp.float32,
                                   -bound, bound)
        self._raw_lin = (w_lin, b_lin)
        self.w_lin_p = (jnp.zeros((self.Hp, self.Op), jnp.float32)
                        .at[:H, :output_size].set(w_lin.T)
                        .astype(jnp.bfloat16))
        self.b_lin_p = (jnp.full((1, self.Op), _NEG_INF, jnp.float32)
                        .at[0, :output_size].set(b_lin))

        self._jit_forward = jax.jit(self._forward_impl)

    def init_hidden(self, batch=1):
        return jnp.zeros((self.num_layers, batch, self.hidden_size),
                         jnp.float32)

    def _forward_impl(self, input1, hidden):
        B = input1.shape[0]
        Bp = max(_SUBLANE, _round_up(B, _SUBLANE))
        x_pad = (jnp.zeros((Bp, self.XP), jnp.float32)
                 .at[:B, :self.input_size].set(input1.astype(jnp.float32)))
        h_pad = (jnp.zeros((self.num_layers, Bp, self.Hp), jnp.float32)
                 .at[:, :B, :self.hidden_size].set(hidden.astype(jnp.float32)))

        logp_pad, hn_pad = pl.pallas_call(
            _fused_gru_kernel,
            out_shape=(
                jax.ShapeDtypeStruct((Bp, self.Op), jnp.float32),
                jax.ShapeDtypeStruct((self.num_layers, Bp, self.Hp),
                                     jnp.float32),
            ),
            in_specs=[_VMEM_SPEC] * 6,
            out_specs=(_VMEM_SPEC, _VMEM_SPEC),
        )(x_pad, h_pad, self.w_all, self.b_all, self.w_lin_p, self.b_lin_p)

        logp = logp_pad[:B, :self.output_size][None, :, :]      # (1, B, O)
        hn = hn_pad[:, :B, :self.hidden_size]                   # (L, B, H)
        return logp, hn

    def forward(self, input1, hidden):
        return self._jit_forward(input1, hidden)


# ------------------------- pure-JAX reference (for checks) --------------------

def _reference_forward(model, x, hidden):
    """Plain jnp reference with the same bf16 weight/activation rounding."""
    def bf(a):
        return a.astype(jnp.bfloat16).astype(jnp.float32)

    H = model.hidden_size
    x = x.astype(jnp.float32)
    new_h = []
    for l, (w_ih, w_hh, b_ih, b_hh) in enumerate(model._raw_layers):
        h = hidden[l]
        gi = jnp.dot(bf(x), bf(w_ih.T), precision="highest") + b_ih
        gh = jnp.dot(bf(h), bf(w_hh.T), precision="highest") + b_hh
        r = jax.nn.sigmoid(gi[:, 0:H] + gh[:, 0:H])
        z = jax.nn.sigmoid(gi[:, H:2 * H] + gh[:, H:2 * H])
        n = jnp.tanh(gi[:, 2 * H:] + r * gh[:, 2 * H:])
        h = (1.0 - z) * n + z * hidden[l]
        new_h.append(h)
        x = h
    w_lin, b_lin = model._raw_lin
    logits = jnp.dot(bf(x), bf(w_lin.T), precision="highest") + b_lin
    logp = jax.nn.log_softmax(logits, axis=-1)
    return logp[None, :, :], jnp.stack(new_h, axis=0)


# --------------------------------- demo ---------------------------------------

if __name__ == "__main__":
    input_size = 16
    hidden_size = 32
    output_size = 8
    num_layers = 2
    batch = 2

    root = jax.random.PRNGKey(0)
    k_model, k_x = jax.random.split(root)

    model = GRUPallas(input_size, hidden_size, output_size, num_layers,
                      key=k_model)

    x = jax.random.normal(k_x, (batch, input_size), jnp.float32)
    h0 = model.init_hidden(batch)

    logp, hn = model.forward(x, h0)
    jax.block_until_ready((logp, hn))

    assert logp.shape == (1, batch, output_size)
    assert hn.shape == (num_layers, batch, hidden_size)
    # log-softmax rows must sum (in prob space) to ~1
    assert bool(jnp.allclose(jnp.sum(jnp.exp(logp), axis=-1), 1.0, atol=1e-5))

    # correctness vs. pure-JAX reference (same bf16 weight rounding)
    logp_ref, hn_ref = _reference_forward(model, x, h0)
    assert bool(jnp.allclose(logp, logp_ref, atol=1e-2, rtol=1e-2))
    assert bool(jnp.allclose(hn, hn_ref, atol=1e-2, rtol=1e-2))

    print("KERNEL_OK")
</pallas_src>

<mosaic_0001>
module attributes {stable_mosaic.version = 11 : i64} {
  func.func @_fused_gru_kernel(%arg0: memref<8x128xf32, #tpu.memory_space<vmem>>, %arg1: memref<2x8x128xf32, #tpu.memory_space<vmem>>, %arg2: memref<2x256x512xbf16, #tpu.memory_space<vmem>>, %arg3: memref<2x1x512xf32, #tpu.memory_space<vmem>>, %arg4: memref<128x128xbf16, #tpu.memory_space<vmem>>, %arg5: memref<1x128xf32, #tpu.memory_space<vmem>>, %arg6: memref<8x128xf32, #tpu.memory_space<vmem>>, %arg7: memref<2x8x128xf32, #tpu.memory_space<vmem>>) attributes {dimension_semantics = [], scalar_prefetch = 0 : i64, scratch_operands = 0 : i64, tpu.core_type = #tpu.core_type<tc>} {
    %c0 = arith.constant 0 : index
    %c0_0 = arith.constant 0 : index
    %0 = vector.load %arg0[%c0, %c0_0] : memref<8x128xf32, #tpu.memory_space<vmem>>, vector<8x128xf32>
    %c0_1 = arith.constant 0 : index
    %c0_2 = arith.constant 0 : index
    %c0_3 = arith.constant 0 : index
    %1 = vector.load %arg1[%c0_1, %c0_2, %c0_3] : memref<2x8x128xf32, #tpu.memory_space<vmem>>, vector<1x8x128xf32>
    %2 = vector.shape_cast %1 : vector<1x8x128xf32> to vector<8x128xf32>
    %3 = tpu.concatenate %0, %2 in 1 : vector<8x128xf32>, vector<8x128xf32> -> vector<8x256xf32>
    %4 = arith.truncf %3 : vector<8x256xf32> to vector<8x256xbf16>
    %c0_4 = arith.constant 0 : index
    %c0_5 = arith.constant 0 : index
    %c0_6 = arith.constant 0 : index
    %5 = vector.load %arg2[%c0_4, %c0_5, %c0_6] : memref<2x256x512xbf16, #tpu.memory_space<vmem>>, vector<1x256x512xbf16>
    %6 = vector.shape_cast %5 : vector<1x256x512xbf16> to vector<256x512xbf16>
    %cst = arith.constant dense<0.000000e+00> : vector<8x512xf32>
    %7 = tpu.matmul %4, %6, %cst {dimension_numbers = #tpu.dot_dimension_numbers<[1], [0], [0], [1], [0, 0, 1, 1], [], []>} : vector<8x256xbf16>, vector<256x512xbf16>, vector<8x512xf32> -> vector<8x512xf32>
    %c0_7 = arith.constant 0 : index
    %c0_8 = arith.constant 0 : index
    %c0_9 = arith.constant 0 : index
    %8 = vector.load %arg3[%c0_7, %c0_8, %c0_9] : memref<2x1x512xf32, #tpu.memory_space<vmem>>, vector<1x1x512xf32>
    %9 = vector.shape_cast %8 : vector<1x1x512xf32> to vector<1x512xf32>
    %10 = vector.broadcast %9 : vector<1x512xf32> to vector<8x512xf32>
    %11 = arith.addf %7, %10 : vector<8x512xf32>
    %12 = vector.extract_strided_slice %11 {offsets = [0, 0], sizes = [8, 128], strides = [1, 1]} : vector<8x512xf32> to vector<8x128xf32>
    %13 = arith.negf %12 : vector<8x128xf32>
    %14 = math.exp %13 : vector<8x128xf32>
    %cst_10 = arith.constant 1.000000e+00 : f32
    %15 = vector.broadcast %cst_10 : f32 to vector<8x128xf32>
    %16 = arith.addf %15, %14 : vector<8x128xf32>
    %17 = arith.divf %15, %16 : vector<8x128xf32>
    %18 = vector.extract_strided_slice %11 {offsets = [0, 128], sizes = [8, 128], strides = [1, 1]} : vector<8x512xf32> to vector<8x128xf32>
    %19 = arith.negf %18 : vector<8x128xf32>
    %20 = math.exp %19 : vector<8x128xf32>
    %cst_11 = arith.constant 1.000000e+00 : f32
    %21 = vector.broadcast %cst_11 : f32 to vector<8x128xf32>
    %22 = arith.addf %21, %20 : vector<8x128xf32>
    %23 = arith.divf %21, %22 : vector<8x128xf32>
    %24 = vector.extract_strided_slice %11 {offsets = [0, 256], sizes = [8, 128], strides = [1, 1]} : vector<8x512xf32> to vector<8x128xf32>
    %25 = vector.extract_strided_slice %11 {offsets = [0, 384], sizes = [8, 128], strides = [1, 1]} : vector<8x512xf32> to vector<8x128xf32>
    %26 = arith.mulf %17, %25 : vector<8x128xf32>
    %27 = arith.addf %24, %26 : vector<8x128xf32>
    %28 = math.tanh %27 : vector<8x128xf32>
    %cst_12 = arith.constant 1.000000e+00 : f32
    %29 = vector.broadcast %cst_12 : f32 to vector<8x128xf32>
    %30 = arith.subf %29, %23 : vector<8x128xf32>
    %31 = arith.mulf %30, %28 : vector<8x128xf32>
    %32 = arith.mulf %23, %2 : vector<8x128xf32>
    %33 = arith.addf %31, %32 : vector<8x128xf32>
    %c0_13 = arith.constant 0 : index
    %c0_14 = arith.constant 0 : index
    %c0_15 = arith.constant 0 : index
    %34 = vector.load %arg7[%c0_13, %c0_14, %c0_15] : memref<2x8x128xf32, #tpu.memory_space<vmem>>, vector<1x8x128xf32>
    %35 = vector.shape_cast %34 : vector<1x8x128xf32> to vector<8x128xf32>
    %36 = vector.shape_cast %33 : vector<8x128xf32> to vector<1x8x128xf32>
    tpu.vector_store %arg7[%c0_13, %c0_14, %c0_15], %36 {strides = array<i32>} : memref<2x8x128xf32, #tpu.memory_space<vmem>>, vector<1x8x128xf32>,
    %c1 = arith.constant 1 : index
    %c0_16 = arith.constant 0 : index
    %c0_17 = arith.constant 0 : index
    %37 = vector.load %arg1[%c1, %c0_16, %c0_17] : memref<2x8x128xf32, #tpu.memory_space<vmem>>, vector<1x8x128xf32>
    %38 = vector.shape_cast %37 : vector<1x8x128xf32> to vector<8x128xf32>
    %39 = tpu.concatenate %33, %38 in 1 : vector<8x128xf32>, vector<8x128xf32> -> vector<8x256xf32>
    %40 = arith.truncf %39 : vector<8x256xf32> to vector<8x256xbf16>
    %c1_18 = arith.constant 1 : index
    %c0_19 = arith.constant 0 : index
    %c0_20 = arith.constant 0 : index
    %41 = vector.load %arg2[%c1_18, %c0_19, %c0_20] : memref<2x256x512xbf16, #tpu.memory_space<vmem>>, vector<1x256x512xbf16>
    %42 = vector.shape_cast %41 : vector<1x256x512xbf16> to vector<256x512xbf16>
    %cst_21 = arith.constant dense<0.000000e+00> : vector<8x512xf32>
    %43 = tpu.matmul %40, %42, %cst_21 {dimension_numbers = #tpu.dot_dimension_numbers<[1], [0], [0], [1], [0, 0, 1, 1], [], []>} : vector<8x256xbf16>, vector<256x512xbf16>, vector<8x512xf32> -> vector<8x512xf32>
    %c1_22 = arith.constant 1 : index
    %c0_23 = arith.constant 0 : index
    %c0_24 = arith.constant 0 : index
    %44 = vector.load %arg3[%c1_22, %c0_23, %c0_24] : memref<2x1x512xf32, #tpu.memory_space<vmem>>, vector<1x1x512xf32>
    %45 = vector.shape_cast %44 : vector<1x1x512xf32> to vector<1x512xf32>
    %46 = vector.broadcast %45 : vector<1x512xf32> to vector<8x512xf32>
    %47 = arith.addf %43, %46 : vector<8x512xf32>
    %48 = vector.extract_strided_slice %47 {offsets = [0, 0], sizes = [8, 128], strides = [1, 1]} : vector<8x512xf32> to vector<8x128xf32>
    %49 = arith.negf %48 : vector<8x128xf32>
    %50 = math.exp %49 : vector<8x128xf32>
    %cst_25 = arith.constant 1.000000e+00 : f32
    %51 = vector.broadcast %cst_25 : f32 to vector<8x128xf32>
    %52 = arith.addf %51, %50 : vector<8x128xf32>
    %53 = arith.divf %51, %52 : vector<8x128xf32>
    %54 = vector.extract_strided_slice %47 {offsets = [0, 128], sizes = [8, 128], strides = [1, 1]} : vector<8x512xf32> to vector<8x128xf32>
    %55 = arith.negf %54 : vector<8x128xf32>
    %56 = math.exp %55 : vector<8x128xf32>
    %cst_26 = arith.constant 1.000000e+00 : f32
    %57 = vector.broadcast %cst_26 : f32 to vector<8x128xf32>
    %58 = arith.addf %57, %56 : vector<8x128xf32>
    %59 = arith.divf %57, %58 : vector<8x128xf32>
    %60 = vector.extract_strided_slice %47 {offsets = [0, 256], sizes = [8, 128], strides = [1, 1]} : vector<8x512xf32> to vector<8x128xf32>
    %61 = vector.extract_strided_slice %47 {offsets = [0, 384], sizes = [8, 128], strides = [1, 1]} : vector<8x512xf32> to vector<8x128xf32>
    %62 = arith.mulf %53, %61 : vector<8x128xf32>
    %63 = arith.addf %60, %62 : vector<8x128xf32>
    %64 = math.tanh %63 : vector<8x128xf32>
    %cst_27 = arith.constant 1.000000e+00 : f32
    %65 = vector.broadcast %cst_27 : f32 to vector<8x128xf32>
    %66 = arith.subf %65, %59 : vector<8x128xf32>
    %67 = arith.mulf %66, %64 : vector<8x128xf32>
    %68 = arith.mulf %59, %38 : vector<8x128xf32>
    %69 = arith.addf %67, %68 : vector<8x128xf32>
    %c1_28 = arith.constant 1 : index
    %c0_29 = arith.constant 0 : index
    %c0_30 = arith.constant 0 : index
    %70 = vector.load %arg7[%c1_28, %c0_29, %c0_30] : memref<2x8x128xf32, #tpu.memory_space<vmem>>, vector<1x8x128xf32>
    %71 = vector.shape_cast %70 : vector<1x8x128xf32> to vector<8x128xf32>
    %72 = vector.shape_cast %69 : vector<8x128xf32> to vector<1x8x128xf32>
    tpu.vector_store %arg7[%c1_28, %c0_29, %c0_30], %72 {strides = array<i32>} : memref<2x8x128xf32, #tpu.memory_space<vmem>>, vector<1x8x128xf32>,
    %73 = arith.truncf %69 : vector<8x128xf32> to vector<8x128xbf16>
    %c0_31 = arith.constant 0 : index
    %c0_32 = arith.constant 0 : index
    %74 = vector.load %arg4[%c0_31, %c0_32] : memref<128x128xbf16, #tpu.memory_space<vmem>>, vector<128x128xbf16>
    %cst_33 = arith.constant dense<0.000000e+00> : vector<8x128xf32>
    %75 = tpu.matmul %73, %74, %cst_33 {dimension_numbers = #tpu.dot_dimension_numbers<[1], [0], [0], [1], [0, 0, 1, 1], [], []>} : vector<8x128xbf16>, vector<128x128xbf16>, vector<8x128xf32> -> vector<8x128xf32>
    %c0_34 = arith.constant 0 : index
    %c0_35 = arith.constant 0 : index
    %76 = vector.load %arg5[%c0_34, %c0_35] : memref<1x128xf32, #tpu.memory_space<vmem>>, vector<1x128xf32>
    %77 = vector.broadcast %76 : vector<1x128xf32> to vector<8x128xf32>
    %78 = arith.addf %75, %77 : vector<8x128xf32>
    %cst_36 = arith.constant dense<0xFF800000> : vector<8xf32>
    %79 = vector.multi_reduction <maximumf>, %78, %cst_36 [1] : vector<8x128xf32> to vector<8xf32>
    %80 = vector.shape_cast %79 : vector<8xf32> to vector<8x1xf32>
    %81 = vector.broadcast %80 : vector<8x1xf32> to vector<8x128xf32>
    %82 = arith.subf %78, %81 : vector<8x128xf32>
    %83 = math.exp %82 : vector<8x128xf32>
    %cst_37 = arith.constant dense<0.000000e+00> : vector<8xf32>
    %84 = vector.multi_reduction <add>, %83, %cst_37 [1] : vector<8x128xf32> to vector<8xf32>
    %85 = vector.shape_cast %84 : vector<8xf32> to vector<8x1xf32>
    %86 = math.log %85 : vector<8x1xf32>
    %87 = vector.broadcast %86 : vector<8x1xf32> to vector<8x128xf32>
    %88 = arith.subf %82, %87 : vector<8x128xf32>
    %c0_38 = arith.constant 0 : index
    %c0_39 = arith.constant 0 : index
    %89 = vector.load %arg6[%c0_38, %c0_39] : memref<8x128xf32, #tpu.memory_space<vmem>>, vector<8x128xf32>
    tpu.vector_store %arg6[%c0_38, %c0_39], %88 {strides = array<i32>} : memref<8x128xf32, #tpu.memory_space<vmem>>, vector<8x128xf32>,
    return
  }
}

</mosaic_0001>

<llo_original>
// kernel: _forward_impl.1
$region0: #{_forward_impl.1}
  #allocation0 [shape = 'u32[]', space=smem, size = 0x4, offset = 0x4, fixed_abs, tag = 'smem constant byte address 0x4 - core index']
  #allocation1 [shape = 'u32[72,128]{1,0:T(1,128)}', space=vmem, size = 0x9000, scoped, tag = 'internal scratch']
  %s0 = inlined_call_operand.vmem [shape: f32[8,128], index: 0, kind: input, shape index: {}]
  %s1 = inlined_call_operand.vmem [shape: f32[2,8,128], index: 1, kind: input, shape index: {}]
  %s2 = inlined_call_operand.hbm [shape: bf16[2,256,512], index: 2, kind: input, shape index: {}]
  %s3 = inlined_call_operand.vmem [shape: f32[2,1,512], index: 3, kind: input, shape index: {}]
  %s4 = inlined_call_operand.hbm [shape: bf16[128,128], index: 4, kind: input, shape index: {}]
  %s5 = inlined_call_operand.vmem [shape: f32[1,128], index: 5, kind: input, shape index: {}]
  %s6 = inlined_call_operand.vmem [shape: f32[8,128], index: 6, kind: output, shape index: {0}]
  %s7 = inlined_call_operand.vmem [shape: f32[2,8,128], index: 7, kind: output, shape index: {1}]
  %8 = xla_tuple %s6, %s7
  %s9 = sld [smem:[#allocation0]]
  $region50: #{_forward_impl.1} parent=0
    _
  %s11 = ssub.s32 1, %s9
  %s12 = scalar_select 0, %s11, %s9
  $region1: #{_forward_impl.1} parent=0
    #allocation2 [shape = 'u8[524288]{0}', space=vmem, size = 0x80000, scoped, tag = 'input window, operand 2, single buffered']
    #allocation3 [shape = 's32[1]{0}', space=sflag, size = 0x4, scoped, tag = 'scoped memory for _forward_impl.1']
    #allocation4 [shape = 'u8[32768]{0}', space=vmem, size = 0x8000, scoped, tag = 'input window, operand 4, single buffered']
    #allocation5 [shape = 's32[1]{0}', space=sflag, size = 0x4, scoped, tag = 'scoped memory for _forward_impl.1']
    %13 = vsyncpa [#allocation3], 0
    %14 = vsyncpa [#allocation5], 0
    // Predicated region
    $region2: #{_forward_impl.1} parent=1 // pred_check
      _
    $region3: #{_forward_impl.1} parent=1 // pred_check_branch
      %16 = sbr.rel (0) target = $region5
    $region4: #{_forward_impl.1} parent=1 // pred_region
      _
    $region5: #{_forward_impl.1} parent=1 // pred_fallthru
      _
    // Predicated region
    $region6: #{_forward_impl.1} parent=1 // pred_check
      _
    $region7: #{_forward_impl.1} parent=1 // pred_check_branch
      %18 = sbr.rel (0) target = $region9
    $region8: #{_forward_impl.1} parent=1 // pred_region
      _
    $region9: #{_forward_impl.1} parent=1 // pred_fallthru
      _
    // Predicated region
    $region10: #{_forward_impl.1} parent=1 // pred_check
      _
    $region11: #{_forward_impl.1} parent=1 // pred_check_branch
      %20 = sbr.rel (0) target = $region13
    $region12: #{_forward_impl.1} parent=1 // pred_region
      %22 = vsyncadd [#allocation3], 0
      %s23 = sshll.u32 %s2, 4
      %s24 = int_to_ptr.hbm [resolvable:$true] %s23
      %s25 = sshll.u32 [#allocation2], 4
      %s26 = int_to_ptr.vmem [resolvable:$true] %s25
      %31 = dma.hbm_to_vmem [thread:$0]  %s24, 16384, %s26, [#allocation3], 256, 256, 16
    $region13: #{_forward_impl.1} parent=1 // pred_fallthru
      _
    // Predicated region
    $region14: #{_forward_impl.1} parent=1 // pred_check
      _
    $region15: #{_forward_impl.1} parent=1 // pred_check_branch
      %33 = sbr.rel (0) target = $region17
    $region16: #{_forward_impl.1} parent=1 // pred_region
      _
    $region17: #{_forward_impl.1} parent=1 // pred_fallthru
      _
    // Predicated region
    $region18: #{_forward_impl.1} parent=1 // pred_check
      _
    $region19: #{_forward_impl.1} parent=1 // pred_check_branch
      %35 = sbr.rel (0) target = $region21
    $region20: #{_forward_impl.1} parent=1 // pred_region
      %37 = vsyncadd [#allocation5], 0
      %s38 = sshll.u32 %s4, 4
      %s39 = int_to_ptr.hbm [resolvable:$true] %s38
      %s40 = sshll.u32 [#allocation4], 4
      %s41 = int_to_ptr.vmem [resolvable:$true] %s40
      %46 = dma.hbm_to_vmem [thread:$0]  %s39, 1024, %s41, [#allocation5], 64, 64, 4
    $region21: #{_forward_impl.1} parent=1 // pred_fallthru
      _
    // Predicated region
    $region22: #{_forward_impl.1} parent=1 // pred_check
      _
    $region23: #{_forward_impl.1} parent=1 // pred_check_branch
      %48 = sbr.rel (0) target = $region25
    $region24: #{_forward_impl.1} parent=1 // pred_region
      _
    $region25: #{_forward_impl.1} parent=1 // pred_fallthru
      _
    // Predicated region
    $region26: #{_forward_impl.1} parent=1 // pred_check
      _
    $region27: #{_forward_impl.1} parent=1 // pred_check_branch
      %50 = sbr.rel (0) target = $region29
    $region28: #{_forward_impl.1} parent=1 // pred_region
      %52 = dma.done [#allocation3], 16384
    $region29: #{_forward_impl.1} parent=1 // pred_fallthru
      _
    // Predicated region
    $region30: #{_forward_impl.1} parent=1 // pred_check
      _
    $region31: #{_forward_impl.1} parent=1 // pred_check_branch
      %54 = sbr.rel (0) target = $region33
    $region32: #{_forward_impl.1} parent=1 // pred_region
      %56 = dma.done [#allocation5], 1024
    $region33: #{_forward_impl.1} parent=1 // pred_fallthru
      _
    %v57 = vld [vmem:[%s0] sm:$0xff]
    %v58 = vld [vmem:[%s1] sm:$0xff]
    %v59 = vpack.c.bf16 %v57, %v57
    %v60 = vpack.c.bf16 %v58, %v58
    %v61 = vld [vmem:[#allocation2] sm:$0xff]
    %v62 = vld [vmem:[#allocation2 + $0x8] sm:$0xff]
    %v63 = vld [vmem:[#allocation2 + $0x10] sm:$0xff]
    %v64 = vld [vmem:[#allocation2 + $0x18] sm:$0xff]
    %v65 = vld [vmem:[#allocation2 + $0x20] sm:$0xff]
    %v66 = vld [vmem:[#allocation2 + $0x28] sm:$0xff]
    %v67 = vld [vmem:[#allocation2 + $0x30] sm:$0xff]
    %v68 = vld [vmem:[#allocation2 + $0x38] sm:$0xff]
    %v69 = vld [vmem:[#allocation2 + $0x40] sm:$0xff]
    %v70 = vld [vmem:[#allocation2 + $0x48] sm:$0xff]
    %v71 = vld [vmem:[#allocation2 + $0x50] sm:$0xff]
    %v72 = vld [vmem:[#allocation2 + $0x58] sm:$0xff]
    %v73 = vld [vmem:[#allocation2 + $0x60] sm:$0xff]
    %v74 = vld [vmem:[#allocation2 + $0x68] sm:$0xff]
    %v75 = vld [vmem:[#allocation2 + $0x70] sm:$0xff]
    %v76 = vld [vmem:[#allocation2 + $0x78] sm:$0xff]
    %v77 = vld [vmem:[#allocation2 + $0x80] sm:$0xff]
    %v78 = vld [vmem:[#allocation2 + $0x88] sm:$0xff]
    %v79 = vld [vmem:[#allocation2 + $0x90] sm:$0xff]
    %v80 = vld [vmem:[#allocation2 + $0x98] sm:$0xff]
    %v81 = vld [vmem:[#allocation2 + $0xa0] sm:$0xff]
    %v82 = vld [vmem:[#allocation2 + $0xa8] sm:$0xff]
    %v83 = vld [vmem:[#allocation2 + $0xb0] sm:$0xff]
    %v84 = vld [vmem:[#allocation2 + $0xb8] sm:$0xff]
    %v85 = vld [vmem:[#allocation2 + $0xc0] sm:$0xff]
    %v86 = vld [vmem:[#allocation2 + $0xc8] sm:$0xff]
    %v87 = vld [vmem:[#allocation2 + $0xd0] sm:$0xff]
    %v88 = vld [vmem:[#allocation2 + $0xd8] sm:$0xff]
    %v89 = vld [vmem:[#allocation2 + $0xe0] sm:$0xff]
    %v90 = vld [vmem:[#allocation2 + $0xe8] sm:$0xff]
    %v91 = vld [vmem:[#allocation2 + $0xf0] sm:$0xff]
    %v92 = vld [vmem:[#allocation2 + $0xf8] sm:$0xff]
    %v93 = vld [vmem:[#allocation2 + $0x100] sm:$0xff]
    %v94 = vld [vmem:[#allocation2 + $0x108] sm:$0xff]
    %v95 = vld [vmem:[#allocation2 + $0x110] sm:$0xff]
    %v96 = vld [vmem:[#allocation2 + $0x118] sm:$0xff]
    %v97 = vld [vmem:[#allocation2 + $0x120] sm:$0xff]
    %v98 = vld [vmem:[#allocation2 + $0x128] sm:$0xff]
    %v99 = vld [vmem:[#allocation2 + $0x130] sm:$0xff]
    %v100 = vld [vmem:[#allocation2 + $0x138] sm:$0xff]
    %v101 = vld [vmem:[#allocation2 + $0x140] sm:$0xff]
    %v102 = vld [vmem:[#allocation2 + $0x148] sm:$0xff]
    %v103 = vld [vmem:[#allocation2 + $0x150] sm:$0xff]
    %v104 = vld [vmem:[#allocation2 + $0x158] sm:$0xff]
    %v105 = vld [vmem:[#allocation2 + $0x160] sm:$0xff]
    %v106 = vld [vmem:[#allocation2 + $0x168] sm:$0xff]
    %v107 = vld [vmem:[#allocation2 + $0x170] sm:$0xff]
    %v108 = vld [vmem:[#allocation2 + $0x178] sm:$0xff]
    %v109 = vld [vmem:[#allocation2 + $0x180] sm:$0xff]
    %v110 = vld [vmem:[#allocation2 + $0x188] sm:$0xff]
    %v111 = vld [vmem:[#allocation2 + $0x190] sm:$0xff]
    %v112 = vld [vmem:[#allocation2 + $0x198] sm:$0xff]
    %v113 = vld [vmem:[#allocation2 + $0x1a0] sm:$0xff]
    %v114 = vld [vmem:[#allocation2 + $0x1a8] sm:$0xff]
    %v115 = vld [vmem:[#allocation2 + $0x1b0] sm:$0xff]
    %v116 = vld [vmem:[#allocation2 + $0x1b8] sm:$0xff]
    %v117 = vld [vmem:[#allocation2 + $0x1c0] sm:$0xff]
    %v118 = vld [vmem:[#allocation2 + $0x1c8] sm:$0xff]
    %v119 = vld [vmem:[#allocation2 + $0x1d0] sm:$0xff]
    %v120 = vld [vmem:[#allocation2 + $0x1d8] sm:$0xff]
    %v121 = vld [vmem:[#allocation2 + $0x1e0] sm:$0xff]
    %v122 = vld [vmem:[#allocation2 + $0x1e8] sm:$0xff]
    %v123 = vld [vmem:[#allocation2 + $0x1f0] sm:$0xff]
    %v124 = vld [vmem:[#allocation2 + $0x1f8] sm:$0xff]
    %v125 = vld [vmem:[%s3] sm:$0xf]
    %v127 = vperm.slane %v125, 0
    %v128 = vperm.slane %v125, 1
    %v129 = vperm.slane %v125, 2
    %v130 = vperm.slane %v125, 3
    %v199 = vunpack.c.l.b16 %v61
    %v200 = vunpack.c.h.b16 %v61
    %v201 = vunpack.c.l.b16 %v62
    %v202 = vunpack.c.h.b16 %v62
    %v203 = vunpack.c.l.b16 %v63
    %v204 = vunpack.c.h.b16 %v63
    %v205 = vunpack.c.l.b16 %v64
    %v206 = vunpack.c.h.b16 %v64
    %v207 = vunpack.c.l.b16 %v65
    %v208 = vunpack.c.h.b16 %v65
    %v209 = vunpack.c.l.b16 %v66
    %v210 = vunpack.c.h.b16 %v66
    %v211 = vunpack.c.l.b16 %v67
    %v212 = vunpack.c.h.b16 %v67
    %v213 = vunpack.c.l.b16 %v68
    %v214 = vunpack.c.h.b16 %v68
    %v215 = vunpack.c.l.b16 %v69
    %v216 = vunpack.c.h.b16 %v69
    %v217 = vunpack.c.l.b16 %v70
    %v218 = vunpack.c.h.b16 %v70
    %v219 = vunpack.c.l.b16 %v71
    %v220 = vunpack.c.h.b16 %v71
    %v221 = vunpack.c.l.b16 %v72
    %v222 = vunpack.c.h.b16 %v72
    %v223 = vunpack.c.l.b16 %v73
    %v224 = vunpack.c.h.b16 %v73
    %v225 = vunpack.c.l.b16 %v74
    %v226 = vunpack.c.h.b16 %v74
    %v227 = vunpack.c.l.b16 %v75
    %v228 = vunpack.c.h.b16 %v75
    %v229 = vunpack.c.l.b16 %v76
    %v230 = vunpack.c.h.b16 %v76
    %v231 = vunpack.c.l.b16 %v77
    %v232 = vunpack.c.h.b16 %v77
    %v233 = vunpack.c.l.b16 %v78
    %v234 = vunpack.c.h.b16 %v78
    %v235 = vunpack.c.l.b16 %v79
    %v236 = vunpack.c.h.b16 %v79
    %v237 = vunpack.c.l.b16 %v80
    %v238 = vunpack.c.h.b16 %v80
    %v239 = vunpack.c.l.b16 %v81
    %v240 = vunpack.c.h.b16 %v81
    %v241 = vunpack.c.l.b16 %v82
    %v242 = vunpack.c.h.b16 %v82
    %v243 = vunpack.c.l.b16 %v83
    %v244 = vunpack.c.h.b16 %v83
    %v245 = vunpack.c.l.b16 %v84
    %v246 = vunpack.c.h.b16 %v84
    %v247 = vunpack.c.l.b16 %v85
    %v248 = vunpack.c.h.b16 %v85
    %v249 = vunpack.c.l.b16 %v86
    %v250 = vunpack.c.h.b16 %v86
    %v251 = vunpack.c.l.b16 %v87
    %v252 = vunpack.c.h.b16 %v87
    %v253 = vunpack.c.l.b16 %v88
    %v254 = vunpack.c.h.b16 %v88
    %v255 = vunpack.c.l.b16 %v89
    %v256 = vunpack.c.h.b16 %v89
    %v257 = vunpack.c.l.b16 %v90
    %v258 = vunpack.c.h.b16 %v90
    %v259 = vunpack.c.l.b16 %v91
    %v260 = vunpack.c.h.b16 %v91
    %v261 = vunpack.c.l.b16 %v92
    %v262 = vunpack.c.h.b16 %v92
    %v263 = vunpack.c.l.b16 %v93
    %v264 = vunpack.c.h.b16 %v93
    %v265 = vunpack.c.l.b16 %v94
    %v266 = vunpack.c.h.b16 %v94
    %v267 = vunpack.c.l.b16 %v95
    %v268 = vunpack.c.h.b16 %v95
    %v269 = vunpack.c.l.b16 %v96
    %v270 = vunpack.c.h.b16 %v96
    %v271 = vunpack.c.l.b16 %v97
    %v272 = vunpack.c.h.b16 %v97
    %v273 = vunpack.c.l.b16 %v98
    %v274 = vunpack.c.h.b16 %v98
    %v275 = vunpack.c.l.b16 %v99
    %v276 = vunpack.c.h.b16 %v99
    %v277 = vunpack.c.l.b16 %v100
    %v278 = vunpack.c.h.b16 %v100
    %v279 = vunpack.c.l.b16 %v101
    %v280 = vunpack.c.h.b16 %v101
    %v281 = vunpack.c.l.b16 %v102
    %v282 = vunpack.c.h.b16 %v102
    %v283 = vunpack.c.l.b16 %v103
    %v284 = vunpack.c.h.b16 %v103
    %v285 = vunpack.c.l.b16 %v104
    %v286 = vunpack.c.h.b16 %v104
    %v287 = vunpack.c.l.b16 %v105
    %v288 = vunpack.c.h.b16 %v105
    %v289 = vunpack.c.l.b16 %v106
    %v290 = vunpack.c.h.b16 %v106
    %v291 = vunpack.c.l.b16 %v107
    %v292 = vunpack.c.h.b16 %v107
    %v293 = vunpack.c.l.b16 %v108
    %v294 = vunpack.c.h.b16 %v108
    %v295 = vunpack.c.l.b16 %v109
    %v296 = vunpack.c.h.b16 %v109
    %v297 = vunpack.c.l.b16 %v110
    %v298 = vunpack.c.h.b16 %v110
    %v299 = vunpack.c.l.b16 %v111
    %v300 = vunpack.c.h.b16 %v111
    %v301 = vunpack.c.l.b16 %v112
    %v302 = vunpack.c.h.b16 %v112
    %v303 = vunpack.c.l.b16 %v113
    %v304 = vunpack.c.h.b16 %v113
    %v305 = vunpack.c.l.b16 %v114
    %v306 = vunpack.c.h.b16 %v114
    %v307 = vunpack.c.l.b16 %v115
    %v308 = vunpack.c.h.b16 %v115
    %v309 = vunpack.c.l.b16 %v116
    %v310 = vunpack.c.h.b16 %v116
    %v311 = vunpack.c.l.b16 %v117
    %v312 = vunpack.c.h.b16 %v117
    %v313 = vunpack.c.l.b16 %v118
    %v314 = vunpack.c.h.b16 %v118
    %v315 = vunpack.c.l.b16 %v119
    %v316 = vunpack.c.h.b16 %v119
    %v317 = vunpack.c.l.b16 %v120
    %v318 = vunpack.c.h.b16 %v120
    %v319 = vunpack.c.l.b16 %v121
    %v320 = vunpack.c.h.b16 %v121
    %v321 = vunpack.c.l.b16 %v122
    %v322 = vunpack.c.h.b16 %v122
    %v323 = vunpack.c.l.b16 %v123
    %v324 = vunpack.c.h.b16 %v123
    %v325 = vunpack.c.l.b16 %v124
    %v326 = vunpack.c.h.b16 %v124
    %v327 = vpack.c.b16 %v203, %v199
    %v328 = vpack.c.b16 %v204, %v200
    %v329 = vpack.c.b16 %v205, %v201
    %v330 = vpack.c.b16 %v206, %v202
    %v331 = vpack.c.b16 %v211, %v207
    %v332 = vpack.c.b16 %v212, %v208
    %v333 = vpack.c.b16 %v213, %v209
    %v334 = vpack.c.b16 %v214, %v210
    %v335 = vpack.c.b16 %v219, %v215
    %v336 = vpack.c.b16 %v220, %v216
    %v337 = vpack.c.b16 %v221, %v217
    %v338 = vpack.c.b16 %v222, %v218
    %v339 = vpack.c.b16 %v227, %v223
    %v340 = vpack.c.b16 %v228, %v224
    %v341 = vpack.c.b16 %v229, %v225
    %v342 = vpack.c.b16 %v230, %v226
    %v343 = vpack.c.b16 %v235, %v231
    %v344 = vpack.c.b16 %v236, %v232
    %v345 = vpack.c.b16 %v237, %v233
    %v346 = vpack.c.b16 %v238, %v234
    %v347 = vpack.c.b16 %v243, %v239
    %v348 = vpack.c.b16 %v244, %v240
    %v349 = vpack.c.b16 %v245, %v241
    %v350 = vpack.c.b16 %v246, %v242
    %v351 = vpack.c.b16 %v251, %v247
    %v352 = vpack.c.b16 %v252, %v248
    %v353 = vpack.c.b16 %v253, %v249
    %v354 = vpack.c.b16 %v254, %v250
    %v355 = vpack.c.b16 %v259, %v255
    %v356 = vpack.c.b16 %v260, %v256
    %v357 = vpack.c.b16 %v261, %v257
    %v358 = vpack.c.b16 %v262, %v258
    %v359 = vpack.c.b16 %v267, %v263
    %v360 = vpack.c.b16 %v268, %v264
    %v361 = vpack.c.b16 %v269, %v265
    %v362 = vpack.c.b16 %v270, %v266
    %v363 = vpack.c.b16 %v275, %v271
    %v364 = vpack.c.b16 %v276, %v272
    %v365 = vpack.c.b16 %v277, %v273
    %v366 = vpack.c.b16 %v278, %v274
    %v367 = vpack.c.b16 %v283, %v279
    %v368 = vpack.c.b16 %v284, %v280
    %v369 = vpack.c.b16 %v285, %v281
    %v370 = vpack.c.b16 %v286, %v282
    %v371 = vpack.c.b16 %v291, %v287
    %v372 = vpack.c.b16 %v292, %v288
    %v373 = vpack.c.b16 %v293, %v289
    %v374 = vpack.c.b16 %v294, %v290
    %v375 = vpack.c.b16 %v299, %v295
    %v376 = vpack.c.b16 %v300, %v296
    %v377 = vpack.c.b16 %v301, %v297
    %v378 = vpack.c.b16 %v302, %v298
    %v379 = vpack.c.b16 %v307, %v303
    %v380 = vpack.c.b16 %v308, %v304
    %v381 = vpack.c.b16 %v309, %v305
    %v382 = vpack.c.b16 %v310, %v306
    %v383 = vpack.c.b16 %v315, %v311
    %v384 = vpack.c.b16 %v316, %v312
    %v385 = vpack.c.b16 %v317, %v313
    %v386 = vpack.c.b16 %v318, %v314
    %v387 = vpack.c.b16 %v323, %v319
    %v388 = vpack.c.b16 %v324, %v320
    %v389 = vpack.c.b16 %v325, %v321
    %v390 = vpack.c.b16 %v326, %v322
    %455 = vmatpush.bf16.msra.mxu0 %v355
    %456 = vmatpush.bf16.msra.mxu0 %v351
    %457 = vmatpush.bf16.msra.mxu0 %v347
    %458 = vmatpush.bf16.msra.mxu0 %v343
    %459 = vmatpush.bf16.msra.mxu0 %v339
    %460 = vmatpush.bf16.msra.mxu0 %v335
    %461 = vmatpush.bf16.msra.mxu0 %v331
    %462 = vmatpush.bf16.msra.mxu0 %v327
    %463 = vmatmul.bf16.gmra.mxu0 %v59
    %v464 = vpop.f32.mrf.mxu0
    %v465 = vadd.f32 %v127, %v464
    %v466 = vpop.f32.mrf.mxu0
    %467 = vdwg.mxu0
    %468 = vmatpush.bf16.msra.mxu0 %v387
    %469 = vmatpush.bf16.msra.mxu0 %v383
    %470 = vmatpush.bf16.msra.mxu0 %v379
    %471 = vmatpush.bf16.msra.mxu0 %v375
    %472 = vmatpush.bf16.msra.mxu0 %v371
    %473 = vmatpush.bf16.msra.mxu0 %v367
    %474 = vmatpush.bf16.msra.mxu0 %v363
    %475 = vmatpush.bf16.msra.mxu0 %v359
    %476 = vmatmul.bf16.gmra.mxu0 %v60
    %v477 = vpop.f32.mrf.mxu0
    %v478 = vadd.f32 %v465, %v477
    %v479 = vpop.f32.mrf.mxu0
    %480 = vdwg.mxu0
    %481 = vmatpush.bf16.msra.mxu0 %v356
    %482 = vmatpush.bf16.msra.mxu0 %v352
    %483 = vmatpush.bf16.msra.mxu0 %v348
    %484 = vmatpush.bf16.msra.mxu0 %v344
    %485 = vmatpush.bf16.msra.mxu0 %v340
    %486 = vmatpush.bf16.msra.mxu0 %v336
    %487 = vmatpush.bf16.msra.mxu0 %v332
    %488 = vmatpush.bf16.msra.mxu0 %v328
    %489 = vmatmul.bf16.gmra.mxu0 %v59
    %v490 = vpop.f32.mrf.mxu0
    %v491 = vadd.f32 %v128, %v490
    %v492 = vpop.f32.mrf.mxu0
    %493 = vdwg.mxu0
    %494 = vmatpush.bf16.msra.mxu0 %v388
    %495 = vmatpush.bf16.msra.mxu0 %v384
    %496 = vmatpush.bf16.msra.mxu0 %v380
    %497 = vmatpush.bf16.msra.mxu0 %v376
    %498 = vmatpush.bf16.msra.mxu0 %v372
    %499 = vmatpush.bf16.msra.mxu0 %v368
    %500 = vmatpush.bf16.msra.mxu0 %v364
    %501 = vmatpush.bf16.msra.mxu0 %v360
    %502 = vmatmul.bf16.gmra.mxu0 %v60
    %v503 = vpop.f32.mrf.mxu0
    %v504 = vadd.f32 %v491, %v503
    %v505 = vpop.f32.mrf.mxu0
    %506 = vdwg.mxu0
    %507 = vmatpush.bf16.msra.mxu0 %v357
    %508 = vmatpush.bf16.msra.mxu0 %v353
    %509 = vmatpush.bf16.msra.mxu0 %v349
    %510 = vmatpush.bf16.msra.mxu0 %v345
    %511 = vmatpush.bf16.msra.mxu0 %v341
    %512 = vmatpush.bf16.msra.mxu0 %v337
    %513 = vmatpush.bf16.msra.mxu0 %v333
    %514 = vmatpush.bf16.msra.mxu0 %v329
    %515 = vmatmul.bf16.gmra.mxu0 %v59
    %v516 = vpop.f32.mrf.mxu0
    %v517 = vadd.f32 %v129, %v516
    %v518 = vpop.f32.mrf.mxu0
    %519 = vdwg.mxu0
    %520 = vmatpush.bf16.msra.mxu0 %v389
    %521 = vmatpush.bf16.msra.mxu0 %v385
    %522 = vmatpush.bf16.msra.mxu0 %v381
    %523 = vmatpush.bf16.msra.mxu0 %v377
    %524 = vmatpush.bf16.msra.mxu0 %v373
    %525 = vmatpush.bf16.msra.mxu0 %v369
    %526 = vmatpush.bf16.msra.mxu0 %v365
    %527 = vmatpush.bf16.msra.mxu0 %v361
    %528 = vmatmul.bf16.gmra.mxu0 %v60
    %v529 = vpop.f32.mrf.mxu0
    %v530 = vadd.f32 %v517, %v529
    %v531 = vpop.f32.mrf.mxu0
    %532 = vdwg.mxu0
    %533 = vmatpush.bf16.msra.mxu0 %v358
    %534 = vmatpush.bf16.msra.mxu0 %v354
    %535 = vmatpush.bf16.msra.mxu0 %v350
    %536 = vmatpush.bf16.msra.mxu0 %v346
    %537 = vmatpush.bf16.msra.mxu0 %v342
    %538 = vmatpush.bf16.msra.mxu0 %v338
    %539 = vmatpush.bf16.msra.mxu0 %v334
    %540 = vmatpush.bf16.msra.mxu0 %v330
    %541 = vmatmul.bf16.gmra.mxu0 %v59
    %v542 = vpop.f32.mrf.mxu0
    %v543 = vadd.f32 %v130, %v542
    %v544 = vpop.f32.mrf.mxu0
    %545 = vdwg.mxu0
    %546 = vmatpush.bf16.msra.mxu0 %v390
    %547 = vmatpush.bf16.msra.mxu0 %v386
    %548 = vmatpush.bf16.msra.mxu0 %v382
    %549 = vmatpush.bf16.msra.mxu0 %v378
    %550 = vmatpush.bf16.msra.mxu0 %v374
    %551 = vmatpush.bf16.msra.mxu0 %v370
    %552 = vmatpush.bf16.msra.mxu0 %v366
    %553 = vmatpush.bf16.msra.mxu0 %v362
    %554 = vmatmul.bf16.gmra.mxu0 %v60
    %v555 = vpop.f32.mrf.mxu0
    %v556 = vadd.f32 %v543, %v555
    %v557 = vpop.f32.mrf.mxu0
    %558 = vdwg.mxu0
    %v559 = vxor.u32 %v478, 2147483648
    %v560 = vmul.f32 %v559, 1.442695
    %v561 = vpow.pop %v560
    %v562 = vadd.f32 %v561, 1.0
    %v563 = vrcp.pop %v562
    %v564 = vmul.f32 %v562, %v563
    %v565 = vsub.f32 1.0, %v564
    %v566 = vmul.f32 %v563, %v565
    %v567 = vadd.f32 %v563, %v566
    %vm568 = vweird.f32 %v562
    %vm569 = vweird.f32 %v563
    %vm570 = vmor %vm568, %vm569
    %v571 = vsel %vm570, %v563, %v567
    %v572 = vand.u32 2147483647, %v562
    %vm573 = vcmp.eq.f32.partialorder %v572, 8.507059e+37
    %v574 = vand.u32 %v562, 2147483648
    %v575 = vor.u32 1.1754944e-38, %v574
    %v576 = vsel %vm573, %v575, %v571
    %v577 = vmul.f32 1.0, %v576
    %v578 = vxor.u32 %v504, 2147483648
    %v579 = vmul.f32 %v578, 1.442695
    %v580 = vpow.pop %v579
    %v581 = vadd.f32 %v580, 1.0
    %v582 = vrcp.pop %v581
    %v583 = vmul.f32 %v581, %v582
    %v584 = vsub.f32 1.0, %v583
    %v585 = vmul.f32 %v582, %v584
    %v586 = vadd.f32 %v582, %v585
    %vm587 = vweird.f32 %v581
    %vm588 = vweird.f32 %v582
    %vm589 = vmor %vm587, %vm588
    %v590 = vsel %vm589, %v582, %v586
    %v591 = vand.u32 2147483647, %v581
    %vm592 = vcmp.eq.f32.partialorder %v591, 8.507059e+37
    %v593 = vand.u32 %v581, 2147483648
    %v594 = vor.u32 1.1754944e-38, %v593
    %v595 = vsel %vm592, %v594, %v590
    %v596 = vmul.f32 1.0, %v595
    %v597 = vmul.f32 %v577, %v556
    %v598 = vadd.f32 %v530, %v597
    %v599 = vtanh.pop %v598
    %v600 = vsub.f32 1.0, %v596
    %v601 = vmul.f32 %v600, %v599
    %v602 = vmul.f32 %v596, %v58
    %v603 = vadd.f32 %v601, %v602
    %604 = vst [vmem:[%s7] sm:$0xff] %v603
    %s605 = scalar_lea.vmem %s1, 8
    %v606 = vld [vmem:[%s605] sm:$0xff]
    %v607 = vpack.c.bf16 %v603, %v603
    %v608 = vpack.c.bf16 %v606, %v606
    %s609 = scalar_lea.vmem [#allocation2], 512
    %v610 = vld [vmem:[%s609] sm:$0xff]
    %v611 = vld [vmem:[%s609 + $0x8] sm:$0xff]
    %v612 = vld [vmem:[%s609 + $0x10] sm:$0xff]
    %v613 = vld [vmem:[%s609 + $0x18] sm:$0xff]
    %v614 = vld [vmem:[%s609 + $0x20] sm:$0xff]
    %v615 = vld [vmem:[%s609 + $0x28] sm:$0xff]
    %v616 = vld [vmem:[%s609 + $0x30] sm:$0xff]
    %v617 = vld [vmem:[%s609 + $0x38] sm:$0xff]
    %v618 = vld [vmem:[%s609 + $0x40] sm:$0xff]
    %v619 = vld [vmem:[%s609 + $0x48] sm:$0xff]
    %v620 = vld [vmem:[%s609 + $0x50] sm:$0xff]
    %v621 = vld [vmem:[%s609 + $0x58] sm:$0xff]
    %v622 = vld [vmem:[%s609 + $0x60] sm:$0xff]
    %v623 = vld [vmem:[%s609 + $0x68] sm:$0xff]
    %v624 = vld [vmem:[%s609 + $0x70] sm:$0xff]
    %v625 = vld [vmem:[%s609 + $0x78] sm:$0xff]
    %v626 = vld [vmem:[%s609 + $0x80] sm:$0xff]
    %v627 = vld [vmem:[%s609 + $0x88] sm:$0xff]
    %v628 = vld [vmem:[%s609 + $0x90] sm:$0xff]
    %v629 = vld [vmem:[%s609 + $0x98] sm:$0xff]
    %v630 = vld [vmem:[%s609 + $0xa0] sm:$0xff]
    %v631 = vld [vmem:[%s609 + $0xa8] sm:$0xff]
    %v632 = vld [vmem:[%s609 + $0xb0] sm:$0xff]
    %v633 = vld [vmem:[%s609 + $0xb8] sm:$0xff]
    %v634 = vld [vmem:[%s609 + $0xc0] sm:$0xff]
    %v635 = vld [vmem:[%s609 + $0xc8] sm:$0xff]
    %v636 = vld [vmem:[%s609 + $0xd0] sm:$0xff]
    %v637 = vld [vmem:[%s609 + $0xd8] sm:$0xff]
    %v638 = vld [vmem:[%s609 + $0xe0] sm:$0xff]
    %v639 = vld [vmem:[%s609 + $0xe8] sm:$0xff]
    %v640 = vld [vmem:[%s609 + $0xf0] sm:$0xff]
    %v641 = vld [vmem:[%s609 + $0xf8] sm:$0xff]
    %v642 = vld [vmem:[%s609 + $0x100] sm:$0xff]
    %v643 = vld [vmem:[%s609 + $0x108] sm:$0xff]
    %v644 = vld [vmem:[%s609 + $0x110] sm:$0xff]
    %v645 = vld [vmem:[%s609 + $0x118] sm:$0xff]
    %v646 = vld [vmem:[%s609 + $0x120] sm:$0xff]
    %v647 = vld [vmem:[%s609 + $0x128] sm:$0xff]
    %v648 = vld [vmem:[%s609 + $0x130] sm:$0xff]
    %v649 = vld [vmem:[%s609 + $0x138] sm:$0xff]
    %v650 = vld [vmem:[%s609 + $0x140] sm:$0xff]
    %v651 = vld [vmem:[%s609 + $0x148] sm:$0xff]
    %v652 = vld [vmem:[%s609 + $0x150] sm:$0xff]
    %v653 = vld [vmem:[%s609 + $0x158] sm:$0xff]
    %v654 = vld [vmem:[%s609 + $0x160] sm:$0xff]
    %v655 = vld [vmem:[%s609 + $0x168] sm:$0xff]
    %v656 = vld [vmem:[%s609 + $0x170] sm:$0xff]
    %v657 = vld [vmem:[%s609 + $0x178] sm:$0xff]
    %v658 = vld [vmem:[%s609 + $0x180] sm:$0xff]
    %v659 = vld [vmem:[%s609 + $0x188] sm:$0xff]
    %v660 = vld [vmem:[%s609 + $0x190] sm:$0xff]
    %v661 = vld [vmem:[%s609 + $0x198] sm:$0xff]
    %v662 = vld [vmem:[%s609 + $0x1a0] sm:$0xff]
    %v663 = vld [vmem:[%s609 + $0x1a8] sm:$0xff]
    %v664 = vld [vmem:[%s609 + $0x1b0] sm:$0xff]
    %v665 = vld [vmem:[%s609 + $0x1b8] sm:$0xff]
    %v666 = vld [vmem:[%s609 + $0x1c0] sm:$0xff]
    %v667 = vld [vmem:[%s609 + $0x1c8] sm:$0xff]
    %v668 = vld [vmem:[%s609 + $0x1d0] sm:$0xff]
    %v669 = vld [vmem:[%s609 + $0x1d8] sm:$0xff]
    %v670 = vld [vmem:[%s609 + $0x1e0] sm:$0xff]
    %v671 = vld [vmem:[%s609 + $0x1e8] sm:$0xff]
    %v672 = vld [vmem:[%s609 + $0x1f0] sm:$0xff]
    %v673 = vld [vmem:[%s609 + $0x1f8] sm:$0xff]
    %s674 = scalar_lea.vmem %s3, 4
    %v675 = vld [vmem:[%s674] sm:$0xf]
    %v677 = vperm.slane %v675, 0
    %v678 = vperm.slane %v675, 1
    %v679 = vperm.slane %v675, 2
    %v680 = vperm.slane %v675, 3
    %v749 = vunpack.c.l.b16 %v610
    %v750 = vunpack.c.h.b16 %v610
    %v751 = vunpack.c.l.b16 %v611
    %v752 = vunpack.c.h.b16 %v611
    %v753 = vunpack.c.l.b16 %v612
    %v754 = vunpack.c.h.b16 %v612
    %v755 = vunpack.c.l.b16 %v613
    %v756 = vunpack.c.h.b16 %v613
    %v757 = vunpack.c.l.b16 %v614
    %v758 = vunpack.c.h.b16 %v614
    %v759 = vunpack.c.l.b16 %v615
    %v760 = vunpack.c.h.b16 %v615
    %v761 = vunpack.c.l.b16 %v616
    %v762 = vunpack.c.h.b16 %v616
    %v763 = vunpack.c.l.b16 %v617
    %v764 = vunpack.c.h.b16 %v617
    %v765 = vunpack.c.l.b16 %v618
    %v766 = vunpack.c.h.b16 %v618
    %v767 = vunpack.c.l.b16 %v619
    %v768 = vunpack.c.h.b16 %v619
    %v769 = vunpack.c.l.b16 %v620
    %v770 = vunpack.c.h.b16 %v620
    %v771 = vunpack.c.l.b16 %v621
    %v772 = vunpack.c.h.b16 %v621
    %v773 = vunpack.c.l.b16 %v622
    %v774 = vunpack.c.h.b16 %v622
    %v775 = vunpack.c.l.b16 %v623
    %v776 = vunpack.c.h.b16 %v623
    %v777 = vunpack.c.l.b16 %v624
    %v778 = vunpack.c.h.b16 %v624
    %v779 = vunpack.c.l.b16 %v625
    %v780 = vunpack.c.h.b16 %v625
    %v781 = vunpack.c.l.b16 %v626
    %v782 = vunpack.c.h.b16 %v626
    %v783 = vunpack.c.l.b16 %v627
    %v784 = vunpack.c.h.b16 %v627
    %v785 = vunpack.c.l.b16 %v628
    %v786 = vunpack.c.h.b16 %v628
    %v787 = vunpack.c.l.b16 %v629
    %v788 = vunpack.c.h.b16 %v629
    %v789 = vunpack.c.l.b16 %v630
    %v790 = vunpack.c.h.b16 %v630
    %v791 = vunpack.c.l.b16 %v631
    %v792 = vunpack.c.h.b16 %v631
    %v793 = vunpack.c.l.b16 %v632
    %v794 = vunpack.c.h.b16 %v632
    %v795 = vunpack.c.l.b16 %v633
    %v796 = vunpack.c.h.b16 %v633
    %v797 = vunpack.c.l.b16 %v634
    %v798 = vunpack.c.h.b16 %v634
    %v799 = vunpack.c.l.b16 %v635
    %v800 = vunpack.c.h.b16 %v635
    %v801 = vunpack.c.l.b16 %v636
    %v802 = vunpack.c.h.b16 %v636
    %v803 = vunpack.c.l.b16 %v637
    %v804 = vunpack.c.h.b16 %v637
    %v805 = vunpack.c.l.b16 %v638
    %v806 = vunpack.c.h.b16 %v638
    %v807 = vunpack.c.l.b16 %v639
    %v808 = vunpack.c.h.b16 %v639
    %v809 = vunpack.c.l.b16 %v640
    %v810 = vunpack.c.h.b16 %v640
    %v811 = vunpack.c.l.b16 %v641
    %v812 = vunpack.c.h.b16 %v641
    %v813 = vunpack.c.l.b16 %v642
    %v814 = vunpack.c.h.b16 %v642
    %v815 = vunpack.c.l.b16 %v643
    %v816 = vunpack.c.h.b16 %v643
    %v817 = vunpack.c.l.b16 %v644
    %v818 = vunpack.c.h.b16 %v644
    %v819 = vunpack.c.l.b16 %v645
    %v820 = vunpack.c.h.b16 %v645
    %v821 = vunpack.c.l.b16 %v646
    %v822 = vunpack.c.h.b16 %v646
    %v823 = vunpack.c.l.b16 %v647
    %v824 = vunpack.c.h.b16 %v647
    %v825 = vunpack.c.l.b16 %v648
    %v826 = vunpack.c.h.b16 %v648
    %v827 = vunpack.c.l.b16 %v649
    %v828 = vunpack.c.h.b16 %v649
    %v829 = vunpack.c.l.b16 %v650
    %v830 = vunpack.c.h.b16 %v650
    %v831 = vunpack.c.l.b16 %v651
    %v832 = vunpack.c.h.b16 %v651
    %v833 = vunpack.c.l.b16 %v652
    %v834 = vunpack.c.h.b16 %v652
    %v835 = vunpack.c.l.b16 %v653
    %v836 = vunpack.c.h.b16 %v653
    %v837 = vunpack.c.l.b16 %v654
    %v838 = vunpack.c.h.b16 %v654
    %v839 = vunpack.c.l.b16 %v655
    %v840 = vunpack.c.h.b16 %v655
    %v841 = vunpack.c.l.b16 %v656
    %v842 = vunpack.c.h.b16 %v656
    %v843 = vunpack.c.l.b16 %v657
    %v844 = vunpack.c.h.b16 %v657
    %v845 = vunpack.c.l.b16 %v658
    %v846 = vunpack.c.h.b16 %v658
    %v847 = vunpack.c.l.b16 %v659
    %v848 = vunpack.c.h.b16 %v659
    %v849 = vunpack.c.l.b16 %v660
    %v850 = vunpack.c.h.b16 %v660
    %v851 = vunpack.c.l.b16 %v661
    %v852 = vunpack.c.h.b16 %v661
    %v853 = vunpack.c.l.b16 %v662
    %v854 = vunpack.c.h.b16 %v662
    %v855 = vunpack.c.l.b16 %v663
    %v856 = vunpack.c.h.b16 %v663
    %v857 = vunpack.c.l.b16 %v664
    %v858 = vunpack.c.h.b16 %v664
    %v859 = vunpack.c.l.b16 %v665
    %v860 = vunpack.c.h.b16 %v665
    %v861 = vunpack.c.l.b16 %v666
    %v862 = vunpack.c.h.b16 %v666
    %v863 = vunpack.c.l.b16 %v667
    %v864 = vunpack.c.h.b16 %v667
    %v865 = vunpack.c.l.b16 %v668
    %v866 = vunpack.c.h.b16 %v668
    %v867 = vunpack.c.l.b16 %v669
    %v868 = vunpack.c.h.b16 %v669
    %v869 = vunpack.c.l.b16 %v670
    %v870 = vunpack.c.h.b16 %v670
    %v871 = vunpack.c.l.b16 %v671
    %v872 = vunpack.c.h.b16 %v671
    %v873 = vunpack.c.l.b16 %v672
    %v874 = vunpack.c.h.b16 %v672
    %v875 = vunpack.c.l.b16 %v673
    %v876 = vunpack.c.h.b16 %v673
    %v877 = vpack.c.b16 %v753, %v749
    %v878 = vpack.c.b16 %v754, %v750
    %v879 = vpack.c.b16 %v755, %v751
    %v880 = vpack.c.b16 %v756, %v752
    %v881 = vpack.c.b16 %v761, %v757
    %v882 = vpack.c.b16 %v762, %v758
    %v883 = vpack.c.b16 %v763, %v759
    %v884 = vpack.c.b16 %v764, %v760
    %v885 = vpack.c.b16 %v769, %v765
    %v886 = vpack.c.b16 %v770, %v766
    %v887 = vpack.c.b16 %v771, %v767
    %v888 = vpack.c.b16 %v772, %v768
    %v889 = vpack.c.b16 %v777, %v773
    %v890 = vpack.c.b16 %v778, %v774
    %v891 = vpack.c.b16 %v779, %v775
    %v892 = vpack.c.b16 %v780, %v776
    %v893 = vpack.c.b16 %v785, %v781
    %v894 = vpack.c.b16 %v786, %v782
    %v895 = vpack.c.b16 %v787, %v783
    %v896 = vpack.c.b16 %v788, %v784
    %v897 = vpack.c.b16 %v793, %v789
    %v898 = vpack.c.b16 %v794, %v790
    %v899 = vpack.c.b16 %v795, %v791
    %v900 = vpack.c.b16 %v796, %v792
    %v901 = vpack.c.b16 %v801, %v797
    %v902 = vpack.c.b16 %v802, %v798
    %v903 = vpack.c.b16 %v803, %v799
    %v904 = vpack.c.b16 %v804, %v800
    %v905 = vpack.c.b16 %v809, %v805
    %v906 = vpack.c.b16 %v810, %v806
    %v907 = vpack.c.b16 %v811, %v807
    %v908 = vpack.c.b16 %v812, %v808
    %v909 = vpack.c.b16 %v817, %v813
    %v910 = vpack.c.b16 %v818, %v814
    %v911 = vpack.c.b16 %v819, %v815
    %v912 = vpack.c.b16 %v820, %v816
    %v913 = vpack.c.b16 %v825, %v821
    %v914 = vpack.c.b16 %v826, %v822
    %v915 = vpack.c.b16 %v827, %v823
    %v916 = vpack.c.b16 %v828, %v824
    %v917 = vpack.c.b16 %v833, %v829
    %v918 = vpack.c.b16 %v834, %v830
    %v919 = vpack.c.b16 %v835, %v831
    %v920 = vpack.c.b16 %v836, %v832
    %v921 = vpack.c.b16 %v841, %v837
    %v922 = vpack.c.b16 %v842, %v838
    %v923 = vpack.c.b16 %v843, %v839
    %v924 = vpack.c.b16 %v844, %v840
    %v925 = vpack.c.b16 %v849, %v845
    %v926 = vpack.c.b16 %v850, %v846
    %v927 = vpack.c.b16 %v851, %v847
    %v928 = vpack.c.b16 %v852, %v848
    %v929 = vpack.c.b16 %v857, %v853
    %v930 = vpack.c.b16 %v858, %v854
    %v931 = vpack.c.b16 %v859, %v855
    %v932 = vpack.c.b16 %v860, %v856
    %v933 = vpack.c.b16 %v865, %v861
    %v934 = vpack.c.b16 %v866, %v862
    %v935 = vpack.c.b16 %v867, %v863
    %v936 = vpack.c.b16 %v868, %v864
    %v937 = vpack.c.b16 %v873, %v869
    %v938 = vpack.c.b16 %v874, %v870
    %v939 = vpack.c.b16 %v875, %v871
    %v940 = vpack.c.b16 %v876, %v872
    %1005 = vmatpush.bf16.msra.mxu0 %v905
    %1006 = vmatpush.bf16.msra.mxu0 %v901
    %1007 = vmatpush.bf16.msra.mxu0 %v897
    %1008 = vmatpush.bf16.msra.mxu0 %v893
    %1009 = vmatpush.bf16.msra.mxu0 %v889
    %1010 = vmatpush.bf16.msra.mxu0 %v885
    %1011 = vmatpush.bf16.msra.mxu0 %v881
    %1012 = vmatpush.bf16.msra.mxu0 %v877
    %1013 = vmatmul.bf16.gmra.mxu0 %v607
    %v1014 = vpop.f32.mrf.mxu0
    %v1015 = vadd.f32 %v677, %v1014
    %v1016 = vpop.f32.mrf.mxu0
    %1017 = vdwg.mxu0
    %1018 = vmatpush.bf16.msra.mxu0 %v937
    %1019 = vmatpush.bf16.msra.mxu0 %v933
    %1020 = vmatpush.bf16.msra.mxu0 %v929
    %1021 = vmatpush.bf16.msra.mxu0 %v925
    %1022 = vmatpush.bf16.msra.mxu0 %v921
    %1023 = vmatpush.bf16.msra.mxu0 %v917
    %1024 = vmatpush.bf16.msra.mxu0 %v913
    %1025 = vmatpush.bf16.msra.mxu0 %v909
    %1026 = vmatmul.bf16.gmra.mxu0 %v608
    %v1027 = vpop.f32.mrf.mxu0
    %v1028 = vadd.f32 %v1015, %v1027
    %v1029 = vpop.f32.mrf.mxu0
    %1030 = vdwg.mxu0
    %1031 = vmatpush.bf16.msra.mxu0 %v906
    %1032 = vmatpush.bf16.msra.mxu0 %v902
    %1033 = vmatpush.bf16.msra.mxu0 %v898
    %1034 = vmatpush.bf16.msra.mxu0 %v894
    %1035 = vmatpush.bf16.msra.mxu0 %v890
    %1036 = vmatpush.bf16.msra.mxu0 %v886
    %1037 = vmatpush.bf16.msra.mxu0 %v882
    %1038 = vmatpush.bf16.msra.mxu0 %v878
    %1039 = vmatmul.bf16.gmra.mxu0 %v607
    %v1040 = vpop.f32.mrf.mxu0
    %v1041 = vadd.f32 %v678, %v1040
    %v1042 = vpop.f32.mrf.mxu0
    %1043 = vdwg.mxu0
    %1044 = vmatpush.bf16.msra.mxu0 %v938
    %1045 = vmatpush.bf16.msra.mxu0 %v934
    %1046 = vmatpush.bf16.msra.mxu0 %v930
    %1047 = vmatpush.bf16.msra.mxu0 %v926
    %1048 = vmatpush.bf16.msra.mxu0 %v922
    %1049 = vmatpush.bf16.msra.mxu0 %v918
    %1050 = vmatpush.bf16.msra.mxu0 %v914
    %1051 = vmatpush.bf16.msra.mxu0 %v910
    %1052 = vmatmul.bf16.gmra.mxu0 %v608
    %v1053 = vpop.f32.mrf.mxu0
    %v1054 = vadd.f32 %v1041, %v1053
    %v1055 = vpop.f32.mrf.mxu0
    %1056 = vdwg.mxu0
    %1057 = vmatpush.bf16.msra.mxu0 %v907
    %1058 = vmatpush.bf16.msra.mxu0 %v903
    %1059 = vmatpush.bf16.msra.mxu0 %v899
    %1060 = vmatpush.bf16.msra.mxu0 %v895
    %1061 = vmatpush.bf16.msra.mxu0 %v891
    %1062 = vmatpush.bf16.msra.mxu0 %v887
    %1063 = vmatpush.bf16.msra.mxu0 %v883
    %1064 = vmatpush.bf16.msra.mxu0 %v879
    %1065 = vmatmul.bf16.gmra.mxu0 %v607
    %v1066 = vpop.f32.mrf.mxu0
    %v1067 = vadd.f32 %v679, %v1066
    %v1068 = vpop.f32.mrf.mxu0
    %1069 = vdwg.mxu0
    %1070 = vmatpush.bf16.msra.mxu0 %v939
    %1071 = vmatpush.bf16.msra.mxu0 %v935
    %1072 = vmatpush.bf16.msra.mxu0 %v931
    %1073 = vmatpush.bf16.msra.mxu0 %v927
    %1074 = vmatpush.bf16.msra.mxu0 %v923
    %1075 = vmatpush.bf16.msra.mxu0 %v919
    %1076 = vmatpush.bf16.msra.mxu0 %v915
    %1077 = vmatpush.bf16.msra.mxu0 %v911
    %1078 = vmatmul.bf16.gmra.mxu0 %v608
    %v1079 = vpop.f32.mrf.mxu0
    %v1080 = vadd.f32 %v1067, %v1079
    %v1081 = vpop.f32.mrf.mxu0
    %1082 = vdwg.mxu0
    %1083 = vmatpush.bf16.msra.mxu0 %v908
    %1084 = vmatpush.bf16.msra.mxu0 %v904
    %1085 = vmatpush.bf16.msra.mxu0 %v900
    %1086 = vmatpush.bf16.msra.mxu0 %v896
    %1087 = vmatpush.bf16.msra.mxu0 %v892
    %1088 = vmatpush.bf16.msra.mxu0 %v888
    %1089 = vmatpush.bf16.msra.mxu0 %v884
    %1090 = vmatpush.bf16.msra.mxu0 %v880
    %1091 = vmatmul.bf16.gmra.mxu0 %v607
    %v1092 = vpop.f32.mrf.mxu0
    %v1093 = vadd.f32 %v680, %v1092
    %v1094 = vpop.f32.mrf.mxu0
    %1095 = vdwg.mxu0
    %1096 = vmatpush.bf16.msra.mxu0 %v940
    %1097 = vmatpush.bf16.msra.mxu0 %v936
    %1098 = vmatpush.bf16.msra.mxu0 %v932
    %1099 = vmatpush.bf16.msra.mxu0 %v928
    %1100 = vmatpush.bf16.msra.mxu0 %v924
    %1101 = vmatpush.bf16.msra.mxu0 %v920
    %1102 = vmatpush.bf16.msra.mxu0 %v916
    %1103 = vmatpush.bf16.msra.mxu0 %v912
    %1104 = vmatmul.bf16.gmra.mxu0 %v608
    %v1105 = vpop.f32.mrf.mxu0
    %v1106 = vadd.f32 %v1093, %v1105
    %v1107 = vpop.f32.mrf.mxu0
    %1108 = vdwg.mxu0
    %v1109 = vxor.u32 %v1028, 2147483648
    %v1110 = vmul.f32 %v1109, 1.442695
    %v1111 = vpow.pop %v1110
    %v1112 = vadd.f32 %v1111, 1.0
    %v1113 = vrcp.pop %v1112
    %v1114 = vmul.f32 %v1112, %v1113
    %v1115 = vsub.f32 1.0, %v1114
    %v1116 = vmul.f32 %v1113, %v1115
    %v1117 = vadd.f32 %v1113, %v1116
    %vm1118 = vweird.f32 %v1112
    %vm1119 = vweird.f32 %v1113
    %vm1120 = vmor %vm1118, %vm1119
    %v1121 = vsel %vm1120, %v1113, %v1117
    %v1122 = vand.u32 2147483647, %v1112
    %vm1123 = vcmp.eq.f32.partialorder %v1122, 8.507059e+37
    %v1124 = vand.u32 %v1112, 2147483648
    %v1125 = vor.u32 1.1754944e-38, %v1124
    %v1126 = vsel %vm1123, %v1125, %v1121
    %v1127 = vmul.f32 1.0, %v1126
    %v1128 = vxor.u32 %v1054, 2147483648
    %v1129 = vmul.f32 %v1128, 1.442695
    %v1130 = vpow.pop %v1129
    %v1131 = vadd.f32 %v1130, 1.0
    %v1132 = vrcp.pop %v1131
    %v1133 = vmul.f32 %v1131, %v1132
    %v1134 = vsub.f32 1.0, %v1133
    %v1135 = vmul.f32 %v1132, %v1134
    %v1136 = vadd.f32 %v1132, %v1135
    %vm1137 = vweird.f32 %v1131
    %vm1138 = vweird.f32 %v1132
    %vm1139 = vmor %vm1137, %vm1138
    %v1140 = vsel %vm1139, %v1132, %v1136
    %v1141 = vand.u32 2147483647, %v1131
    %vm1142 = vcmp.eq.f32.partialorder %v1141, 8.507059e+37
    %v1143 = vand.u32 %v1131, 2147483648
    %v1144 = vor.u32 1.1754944e-38, %v1143
    %v1145 = vsel %vm1142, %v1144, %v1140
    %v1146 = vmul.f32 1.0, %v1145
    %v1147 = vmul.f32 %v1127, %v1106
    %v1148 = vadd.f32 %v1080, %v1147
    %v1149 = vtanh.pop %v1148
    %v1150 = vsub.f32 1.0, %v1146
    %v1151 = vmul.f32 %v1150, %v1149
    %v1152 = vmul.f32 %v1146, %v606
    %v1153 = vadd.f32 %v1151, %v1152
    %s1154 = scalar_lea.vmem %s7, 8
    %1155 = vst [vmem:[%s1154] sm:$0xff] %v1153
    %v1156 = vpack.c.bf16 %v1153, %v1153
    %v1157 = vld [vmem:[#allocation4] sm:$0xf]
    %v1158 = vld [vmem:[#allocation4 + $0x4] sm:$0xf]
    %v1159 = vld [vmem:[#allocation4 + $0x8] sm:$0xf]
    %v1160 = vld [vmem:[#allocation4 + $0xc] sm:$0xf]
    %v1161 = vld [vmem:[#allocation4 + $0x10] sm:$0xf]
    %v1162 = vld [vmem:[#allocation4 + $0x14] sm:$0xf]
    %v1163 = vld [vmem:[#allocation4 + $0x18] sm:$0xf]
    %v1164 = vld [vmem:[#allocation4 + $0x1c] sm:$0xf]
    %v1165 = vld [vmem:[#allocation4 + $0x20] sm:$0xf]
    %v1166 = vld [vmem:[#allocation4 + $0x24] sm:$0xf]
    %v1167 = vld [vmem:[#allocation4 + $0x28] sm:$0xf]
    %v1168 = vld [vmem:[#allocation4 + $0x2c] sm:$0xf]
    %v1169 = vld [vmem:[#allocation4 + $0x30] sm:$0xf]
    %v1170 = vld [vmem:[#allocation4 + $0x34] sm:$0xf]
    %v1171 = vld [vmem:[#allocation4 + $0x38] sm:$0xf]
    %v1172 = vld [vmem:[#allocation4 + $0x3c] sm:$0xf]
    %v1173 = vld [vmem:[%s5] sm:$0x1]
    %v1175 = vperm.slane %v1173, 0
    %v1193 = vunpack.c.l.b16 %v1157
    %v1194 = vunpack.c.l.b16 %v1158
    %v1195 = vunpack.c.l.b16 %v1159
    %v1196 = vunpack.c.l.b16 %v1160
    %v1197 = vunpack.c.l.b16 %v1161
    %v1198 = vunpack.c.l.b16 %v1162
    %v1199 = vunpack.c.l.b16 %v1163
    %v1200 = vunpack.c.l.b16 %v1164
    %v1201 = vunpack.c.l.b16 %v1165
    %v1202 = vunpack.c.l.b16 %v1166
    %v1203 = vunpack.c.l.b16 %v1167
    %v1204 = vunpack.c.l.b16 %v1168
    %v1205 = vunpack.c.l.b16 %v1169
    %v1206 = vunpack.c.l.b16 %v1170
    %v1207 = vunpack.c.l.b16 %v1171
    %v1208 = vunpack.c.l.b16 %v1172
    %v1209 = vpack.c.b16 %v1194, %v1193
    %v1210 = vpack.c.b16 %v1196, %v1195
    %v1211 = vpack.c.b16 %v1198, %v1197
    %v1212 = vpack.c.b16 %v1200, %v1199
    %v1213 = vpack.c.b16 %v1202, %v1201
    %v1214 = vpack.c.b16 %v1204, %v1203
    %v1215 = vpack.c.b16 %v1206, %v1205
    %v1216 = vpack.c.b16 %v1208, %v1207
    %1225 = vmatpush.bf16.msra.mxu0 %v1216
    %1226 = vmatpush.bf16.msra.mxu0 %v1215
    %1227 = vmatpush.bf16.msra.mxu0 %v1214
    %1228 = vmatpush.bf16.msra.mxu0 %v1213
    %1229 = vmatpush.bf16.msra.mxu0 %v1212
    %1230 = vmatpush.bf16.msra.mxu0 %v1211
    %1231 = vmatpush.bf16.msra.mxu0 %v1210
    %1232 = vmatpush.bf16.msra.mxu0 %v1209
    %1233 = vmatmul.bf16.gmra.mxu0 %v1156
    %v1234 = vpop.f32.mrf.mxu0
    %v1235 = vadd.f32 %v1175, %v1234
    %v1236 = vpop.f32.mrf.mxu0
    %1237 = vdwg.mxu0
    %1238 = vmax.xlane.f32.xlu0 %v1235
    %v1239 = vpop.xlane.xlu0 %1238
    %v1240 = vsub.f32 %v1235, %v1239
    %v1241 = vmul.f32 %v1240, 1.442695
    %v1242 = vpow.pop %v1241
    %1243 = vadd.xlane.f32.xlu0 %v1242
    %v1244 = vpop.xlane.xlu0 %1243
    %v1245 = vlog2.pop %v1244
    %v1246 = vmul.f32 %v1245, 0.6931472
    %v1247 = vsub.f32 %v1240, %v1246
    %1248 = vst [vmem:[%s6] sm:$0xff] %v1247
    // Predicated region
    $region34: #{_forward_impl.1} parent=1 // pred_check
      _
    $region35: #{_forward_impl.1} parent=1 // pred_check_branch
      %1250 = sbr.rel (0) target = $region37
    $region36: #{_forward_impl.1} parent=1 // pred_region
      _
    $region37: #{_forward_impl.1} parent=1 // pred_fallthru
      _
    // Predicated region
    $region38: #{_forward_impl.1} parent=1 // pred_check
      _
    $region39: #{_forward_impl.1} parent=1 // pred_check_branch
      %1252 = sbr.rel (0) target = $region41
    $region40: #{_forward_impl.1} parent=1 // pred_region
      _
    $region41: #{_forward_impl.1} parent=1 // pred_fallthru
      _
    // Predicated region
    $region42: #{_forward_impl.1} parent=1 // pred_check
      _
    $region43: #{_forward_impl.1} parent=1 // pred_check_branch
      %1254 = sbr.rel (0) target = $region45
    $region44: #{_forward_impl.1} parent=1 // pred_region
      _
    $region45: #{_forward_impl.1} parent=1 // pred_fallthru
      _
    // Predicated region
    $region46: #{_forward_impl.1} parent=1 // pred_check
      _
    $region47: #{_forward_impl.1} parent=1 // pred_check_branch
      %1256 = sbr.rel (0) target = $region49
    $region48: #{_forward_impl.1} parent=1 // pred_region
      _
    $region49: #{_forward_impl.1} parent=1 // pred_fallthru
      _
    %1257 = vsyncpa [#allocation3], 1
    %1258 = vsyncpa [#allocation5], 1

</llo_original>
